<compile_context>
chip_gen: v6e
topology: v6e:2x2x1
jax: 0.10.0
libtpu: 0.0.40
codegen_flags: <defaults>
</compile_context>

<pallas_src>
import functools

import jax
import jax.numpy as jnp
from jax import lax
from jax.experimental import pallas as pl
from jax.experimental.pallas import tpu as pltpu
import numpy as np

_LANE = 128
_SUBLANE = 8


def _round_up(n: int, m: int) -> int:
    return ((n + m - 1) // m) * m


def _mlp_kernel(x_ref, w_ref, b_ref, o_ref, *, num_layers: int):
    """One (TM, D) row-block of the whole MLP.

    x_ref : (TM, D)     activation block (feature dim zero-padded to D)
    w_ref : (L, D, D)   stacked zero-padded weights (single DMA, VMEM-resident)
    b_ref : (L, 1, D)   stacked zero-padded biases  (single DMA, VMEM-resident)
    o_ref : (TM, D)     lane-dense output block

    Layers 0..L-2 apply ReLU (hidden layers + fc); layer L-1 (fcpredict) does not.
    """
    x = x_ref[...]

    def layer(li, acc):
        w = w_ref[li]          # (D, D)
        b = b_ref[li]          # (1, D)
        y = jnp.dot(acc, w, preferred_element_type=jnp.float32) + b
        return jnp.maximum(y, 0.0)

    # fori_loop (not a static Python loop) bounds the per-layer weight-vreg
    # live ranges; trip count is tiny so loop overhead is negligible vs the
    # (TM x D x D) matmul per iteration.
    x = lax.fori_loop(0, num_layers - 1, layer, x)

    # Final layer (fcpredict): no activation.
    w = w_ref[num_layers - 1]
    b = b_ref[num_layers - 1]
    y = jnp.dot(x, w, preferred_element_type=jnp.float32) + b
    o_ref[...] = y.astype(o_ref.dtype)


def netpg_forward_fused(x, w_stack, b_stack, output_channels, *, tm_max=256):
    """Single fused pallas_call for the whole NetPg forward pass.

    x        : (M, input_channels) f32
    w_stack  : (L, D, D) zero-padded stacked weights
    b_stack  : (L, 1, D) zero-padded stacked biases
    Returns (M, output_channels).
    """
    M, K = x.shape
    L, D, _ = w_stack.shape

    # Row-block size: as large as possible up to tm_max, sublane-aligned.
    TM = min(tm_max, _round_up(M, _SUBLANE))
    M_pad = _round_up(M, TM)

    # Zero-pad the input to (M_pad, D): padded feature columns multiply zero
    # weight rows, padded batch rows are sliced off below.
    x_pad = jnp.zeros((M_pad, D), x.dtype).at[:M, :K].set(x)

    out_padded = pl.pallas_call(
        functools.partial(_mlp_kernel, num_layers=L),
        out_shape=jax.ShapeDtypeStruct((M_pad, D), x.dtype),
        grid=(M_pad // TM,),
        in_specs=[
            pl.BlockSpec((TM, D), lambda i: (i, 0)),          # activations: per-row block
            pl.BlockSpec((L, D, D), lambda i: (0, 0, 0)),     # weights: DMA'd once
            pl.BlockSpec((L, 1, D), lambda i: (0, 0, 0)),     # biases:  DMA'd once
        ],
        out_specs=pl.BlockSpec((TM, D), lambda i: (i, 0)),
        compiler_params=pltpu.CompilerParams(
            dimension_semantics=("parallel",)),               # both TCs on v7x
    )(x_pad, w_stack, b_stack)

    # Padded columns/rows are exactly zero / unused by construction.
    # TODO(synk): at very large M let the consumer accept the lane-padded
    # (M, D) slab or fuse this slice into the next op to avoid the HBM re-read.
    return out_padded[:M, :output_channels]


def init_netpg_params(key, input_channels, output_channels, hidden_units, khidden):
    """Deterministic init mimicking nn.Linear default (uniform +-1/sqrt(fan_in)).

    Returns:
      params  : list of (w (K, N), b (N,)) unpadded -- for the reference check
      w_stack : (L, D, D) zero-padded stacked weights (D = common lane-padded width)
      b_stack : (L, 1, D) zero-padded stacked biases
    """
    layer_dims = []
    prev = input_channels
    for i in range(khidden.shape[0]):
        out = int(khidden[i]) * hidden_units
        layer_dims.append((prev, out))
        prev = out
    layer_dims.append((prev, output_channels))              # fc
    layer_dims.append((output_channels, output_channels))   # fcpredict

    params = []
    for (fan_in, fan_out) in layer_dims:
        key, kw, kb = jax.random.split(key, 3)
        bound = 1.0 / np.sqrt(fan_in)
        w = jax.random.uniform(kw, (fan_in, fan_out), jnp.float32, -bound, bound)
        b = jax.random.uniform(kb, (fan_out,), jnp.float32, -bound, bound)
        params.append((w, b))

    # One common lane-padded feature width D so all weights stack into a
    # single (L, D, D) operand and all biases into a single (L, 1, D)
    # operand: 3 input DMAs per call instead of 1 + 2*L.
    D = _round_up(max([input_channels] + [n for _, n in layer_dims]), _LANE)
    L = len(params)
    w_stack = jnp.zeros((L, D, D), jnp.float32)
    b_stack = jnp.zeros((L, 1, D), jnp.float32)
    for li, (w, b) in enumerate(params):
        kf, nf = w.shape
        w_stack = w_stack.at[li, :kf, :nf].set(w)
        b_stack = b_stack.at[li, 0, :nf].set(b)

    return params, w_stack, b_stack


if __name__ == "__main__":
    # Shapes consistent with the module's forward (flattened Pd/Qd load
    # features).  batch=256 so one pallas_call is no longer launch-bound.
    batch = 256
    input_channels = 32
    hidden_units = 32
    khidden = np.array([2, 1], dtype=np.int32)   # hidden widths: 64, 32
    output_channels = 8

    key = jax.random.PRNGKey(0)
    key, kx = jax.random.split(key)
    x = jax.random.normal(kx, (batch, input_channels), dtype=jnp.float32)

    params, w_stack, b_stack = init_netpg_params(
        key, input_channels, output_channels, hidden_units, khidden)

    out = netpg_forward_fused(x, w_stack, b_stack, output_channels)
    out = jax.block_until_ready(out)

    # Pure-JAX reference on the unpadded parameters.
    nl = khidden.shape[0]
    ref = x
    for i in range(nl):
        w, b = params[i]
        ref = jnp.maximum(ref @ w + b, 0.0)
    w, b = params[nl]
    ref = jnp.maximum(ref @ w + b, 0.0)
    w, b = params[nl + 1]
    ref = ref @ w + b
    np.testing.assert_allclose(np.asarray(out), np.asarray(ref), rtol=1e-5, atol=1e-5)

    assert out.shape == (batch, output_channels)
    print("KERNEL_OK")
</pallas_src>

<mosaic_0001>
module attributes {stable_mosaic.version = 11 : i64} {
  func.func @_mlp_kernel(%arg0: i32, %arg1: memref<256x128xf32, #tpu.memory_space<vmem>>, %arg2: memref<4x128x128xf32, #tpu.memory_space<vmem>>, %arg3: memref<4x1x128xf32, #tpu.memory_space<vmem>>, %arg4: memref<256x128xf32, #tpu.memory_space<vmem>>) attributes {dimension_semantics = [#tpu.dimension_semantics<parallel>], iteration_bounds = array<i64: 1>, scalar_prefetch = 0 : i64, scratch_operands = 0 : i64, tpu.core_type = #tpu.core_type<tc>, window_params = [{transform_indices = @transform_0, window_bounds = array<i64: 256, 128>}, {pipeline_mode = #tpu.pipeline_mode<synchronous>, transform_indices = @transform_1, window_bounds = array<i64: 4, 128, 128>}, {pipeline_mode = #tpu.pipeline_mode<synchronous>, transform_indices = @transform_2, window_bounds = array<i64: 4, 1, 128>}, {transform_indices = @transform_3, window_bounds = array<i64: 256, 128>}]} {
    %c0 = arith.constant 0 : index
    %c0_0 = arith.constant 0 : index
    %0 = vector.load %arg1[%c0, %c0_0] : memref<256x128xf32, #tpu.memory_space<vmem>>, vector<256x128xf32>
    %c0_i32 = arith.constant 0 : i32
    %c3_i32 = arith.constant 3 : i32
    %1 = arith.addi %c0_i32, %c3_i32 : i32
    %c1_i32 = arith.constant 1 : i32
    %2 = scf.for %arg5 = %c0_i32 to %1 step %c1_i32 iter_args(%arg6 = %0) -> (vector<256x128xf32>)  : i32 {
      %11 = arith.index_cast %arg5 : i32 to index
      %c0_9 = arith.constant 0 : index
      %c0_10 = arith.constant 0 : index
      %12 = vector.load %arg2[%11, %c0_9, %c0_10] : memref<4x128x128xf32, #tpu.memory_space<vmem>>, vector<1x128x128xf32>
      %13 = vector.shape_cast %12 : vector<1x128x128xf32> to vector<128x128xf32>
      %14 = arith.index_cast %arg5 : i32 to index
      %c0_11 = arith.constant 0 : index
      %c0_12 = arith.constant 0 : index
      %15 = vector.load %arg3[%14, %c0_11, %c0_12] : memref<4x1x128xf32, #tpu.memory_space<vmem>>, vector<1x1x128xf32>
      %16 = vector.shape_cast %15 : vector<1x1x128xf32> to vector<1x128xf32>
      %cst_13 = arith.constant dense<0.000000e+00> : vector<256x128xf32>
      %17 = tpu.matmul %arg6, %13, %cst_13 {dimension_numbers = #tpu.dot_dimension_numbers<[1], [0], [0], [1], [0, 0, 1, 1], [], []>} : vector<256x128xf32>, vector<128x128xf32>, vector<256x128xf32> -> vector<256x128xf32>
      %18 = vector.broadcast %16 : vector<1x128xf32> to vector<256x128xf32>
      %19 = arith.addf %17, %18 : vector<256x128xf32>
      %cst_14 = arith.constant 0.000000e+00 : f32
      %20 = vector.broadcast %cst_14 : f32 to vector<256x128xf32>
      %21 = arith.maximumf %19, %20 : vector<256x128xf32>
      scf.yield %21 : vector<256x128xf32>
    }
    %c3_i32_1 = arith.constant 3 : i32
    %c3 = arith.constant 3 : index
    %c0_2 = arith.constant 0 : index
    %c0_3 = arith.constant 0 : index
    %3 = vector.load %arg2[%c3, %c0_2, %c0_3] : memref<4x128x128xf32, #tpu.memory_space<vmem>>, vector<1x128x128xf32>
    %4 = vector.shape_cast %3 : vector<1x128x128xf32> to vector<128x128xf32>
    %c3_4 = arith.constant 3 : index
    %c0_5 = arith.constant 0 : index
    %c0_6 = arith.constant 0 : index
    %5 = vector.load %arg3[%c3_4, %c0_5, %c0_6] : memref<4x1x128xf32, #tpu.memory_space<vmem>>, vector<1x1x128xf32>
    %6 = vector.shape_cast %5 : vector<1x1x128xf32> to vector<1x128xf32>
    %cst = arith.constant dense<0.000000e+00> : vector<256x128xf32>
    %7 = tpu.matmul %2, %4, %cst {dimension_numbers = #tpu.dot_dimension_numbers<[1], [0], [0], [1], [0, 0, 1, 1], [], []>} : vector<256x128xf32>, vector<128x128xf32>, vector<256x128xf32> -> vector<256x128xf32>
    %8 = vector.broadcast %6 : vector<1x128xf32> to vector<256x128xf32>
    %9 = arith.addf %7, %8 : vector<256x128xf32>
    %c0_7 = arith.constant 0 : index
    %c0_8 = arith.constant 0 : index
    %10 = vector.load %arg4[%c0_7, %c0_8] : memref<256x128xf32, #tpu.memory_space<vmem>>, vector<256x128xf32>
    tpu.vector_store %arg4[%c0_7, %c0_8], %9 {strides = array<i32>} : memref<256x128xf32, #tpu.memory_space<vmem>>, vector<256x128xf32>,
    return
  }
  func.func @transform_0(%arg0: i32) -> (i32, i32) {
    %c0_i32 = arith.constant 0 : i32
    %c0_i32_0 = arith.constant 0 : i32
    return %arg0, %c0_i32 : i32, i32
  }
  func.func @transform_1(%arg0: i32) -> (i32, i32, i32) {
    %c0_i32 = arith.constant 0 : i32
    %c0_i32_0 = arith.constant 0 : i32
    %c0_i32_1 = arith.constant 0 : i32
    %c0_i32_2 = arith.constant 0 : i32
    return %c0_i32, %c0_i32_0, %c0_i32_1 : i32, i32, i32
  }
  func.func @transform_2(%arg0: i32) -> (i32, i32, i32) {
    %c0_i32 = arith.constant 0 : i32
    %c0_i32_0 = arith.constant 0 : i32
    %c0_i32_1 = arith.constant 0 : i32
    %c0_i32_2 = arith.constant 0 : i32
    return %c0_i32, %c0_i32_0, %c0_i32_1 : i32, i32, i32
  }
  func.func @transform_3(%arg0: i32) -> (i32, i32) {
    %c0_i32 = arith.constant 0 : i32
    %c0_i32_0 = arith.constant 0 : i32
    return %arg0, %c0_i32 : i32, i32
  }
}

</mosaic_0001>

<llo_original>
// kernel: tpu_custom_call.1
$region0: #{tpu_custom_call.1}
  #allocation0 [shape = 'u32[]', space=smem, size = 0x4, offset = 0x4, fixed_abs, tag = 'smem constant byte address 0x4 - core index']
  #allocation1 [shape = 'u32[144,128]{1,0:T(1,128)}', space=vmem, size = 0x12000, scoped, tag = 'internal scratch']
  %s0 = inlined_call_operand.hbm [shape: f32[256,128], index: 0, kind: input, shape index: {}]
  %s1 = inlined_call_operand.hbm [shape: f32[4,128,128], index: 1, kind: input, shape index: {}]
  %s2 = inlined_call_operand.hbm [shape: f32[4,1,128], index: 2, kind: input, shape index: {}]
  %s3 = inlined_call_operand.hbm [shape: f32[256,128], index: 3, kind: output, shape index: {}]
  %s4 = sld [smem:[#allocation0]]
  $region41: #{tpu_custom_call.1} parent=0
    _
  %s6 = ssub.s32 1, %s4
  %s7 = scalar_select 0, %s6, %s4
  $region1: #{tpu_custom_call.1} parent=0
    #allocation2 [shape = 'u8[131072]{0}', space=vmem, size = 0x20000, scoped, tag = 'input window, operand 0, single buffered']
    #allocation3 [shape = 's32[1]{0}', space=sflag, size = 0x4, scoped, tag = 'scoped memory for tpu_custom_call.1']
    #allocation4 [shape = 's32[1]{0}', space=sflag, size = 0x4, scoped, tag = 'scoped memory for tpu_custom_call.1']
    #allocation5 [shape = 'u8[262144]{0}', space=vmem, size = 0x40000, scoped, tag = 'input window, operand 1, single buffered']
    #allocation6 [shape = 's32[1]{0}', space=sflag, size = 0x4, scoped, tag = 'scoped memory for tpu_custom_call.1']
    #allocation7 [shape = 'u8[2048]{0}', space=vmem, size = 0x800, scoped, tag = 'input window, operand 2, single buffered']
    #allocation8 [shape = 'u8[131072]{0}', space=vmem, size = 0x20000, scoped, tag = 'output window, operand 0, single buffered']
    %8 = vsyncpa [#allocation3], 0
    %9 = vsyncpa [#allocation6], 0
    %10 = vsyncpa [#allocation4], 0
    // Predicated region
    $region2: #{tpu_custom_call.1} parent=1 // pred_check
      _
    $region3: #{tpu_custom_call.1} parent=1 // pred_check_branch
      %12 = sbr.rel (0) target = $region5
    $region4: #{tpu_custom_call.1} parent=1 // pred_region
      %s14 = ssub.s32 4096, 4096
      %15 = vsyncadd [#allocation3], %s14
      %s16 = sshll.u32 [#allocation2], 4
      %s17 = int_to_ptr.vmem [resolvable:$true] %s16
      %22 = dma.hbm_to_vmem [thread:$0]  %s0, 4096, %s17, [#allocation3], 128, 128, 8
    $region5: #{tpu_custom_call.1} parent=1 // pred_fallthru
      _
    // Predicated region
    $region6: #{tpu_custom_call.1} parent=1 // pred_check
      _
    $region7: #{tpu_custom_call.1} parent=1 // pred_check_branch
      %24 = sbr.rel (0) target = $region9
    $region8: #{tpu_custom_call.1} parent=1 // pred_region
      %s26 = ssub.s32 8192, 8192
      %27 = vsyncadd [#allocation6], %s26
      %s28 = sshll.u32 [#allocation5], 4
      %s29 = int_to_ptr.vmem [resolvable:$true] %s28
      %34 = dma.hbm_to_vmem [thread:$0]  %s1, 8192, %s29, [#allocation6], 128, 128, 8
    $region9: #{tpu_custom_call.1} parent=1 // pred_fallthru
      _
    // Predicated region
    $region10: #{tpu_custom_call.1} parent=1 // pred_check
      _
    $region11: #{tpu_custom_call.1} parent=1 // pred_check_branch
      %36 = sbr.rel (0) target = $region13
    $region12: #{tpu_custom_call.1} parent=1 // pred_region
      %s38 = ssub.s32 64, 64
      %39 = vsyncadd [#allocation6], %s38
      %s40 = sshll.u32 [#allocation7], 4
      %s41 = int_to_ptr.vmem [resolvable:$true] %s40
      %46 = dma.hbm_to_vmem [thread:$0]  %s2, 64, %s41, [#allocation6], 16, 16, 1
    $region13: #{tpu_custom_call.1} parent=1 // pred_fallthru
      _
    // Predicated region
    $region14: #{tpu_custom_call.1} parent=1 // pred_check
      _
    $region15: #{tpu_custom_call.1} parent=1 // pred_check_branch
      %48 = sbr.rel (0) target = $region17
    $region16: #{tpu_custom_call.1} parent=1 // pred_region
      %49 = dma.done [#allocation3], 4096
    $region17: #{tpu_custom_call.1} parent=1 // pred_fallthru
      _
    // Predicated region
    $region18: #{tpu_custom_call.1} parent=1 // pred_check
      _
    $region19: #{tpu_custom_call.1} parent=1 // pred_check_branch
      %51 = sbr.rel (0) target = $region21
    $region20: #{tpu_custom_call.1} parent=1 // pred_region
      %52 = dma.done [#allocation6], 8192
    $region21: #{tpu_custom_call.1} parent=1 // pred_fallthru
      _
    // Predicated region
    $region22: #{tpu_custom_call.1} parent=1 // pred_check
      _
    $region23: #{tpu_custom_call.1} parent=1 // pred_check_branch
      %54 = sbr.rel (0) target = $region25
    $region24: #{tpu_custom_call.1} parent=1 // pred_region
      %55 = dma.done [#allocation6], 64
    $region25: #{tpu_custom_call.1} parent=1 // pred_fallthru
      _
    %v56 = vld [vmem:[#allocation2] sm:$0xff]
    %v57 = vld [vmem:[#allocation2 + $0x8] sm:$0xff]
    %v58 = vld [vmem:[#allocation2 + $0x10] sm:$0xff]
    %v59 = vld [vmem:[#allocation2 + $0x18] sm:$0xff]
    %v60 = vld [vmem:[#allocation2 + $0x20] sm:$0xff]
    %v61 = vld [vmem:[#allocation2 + $0x28] sm:$0xff]
    %v62 = vld [vmem:[#allocation2 + $0x30] sm:$0xff]
    %v63 = vld [vmem:[#allocation2 + $0x38] sm:$0xff]
    %v64 = vld [vmem:[#allocation2 + $0x40] sm:$0xff]
    %v65 = vld [vmem:[#allocation2 + $0x48] sm:$0xff]
    %v66 = vld [vmem:[#allocation2 + $0x50] sm:$0xff]
    %v67 = vld [vmem:[#allocation2 + $0x58] sm:$0xff]
    %v68 = vld [vmem:[#allocation2 + $0x60] sm:$0xff]
    %v69 = vld [vmem:[#allocation2 + $0x68] sm:$0xff]
    %v70 = vld [vmem:[#allocation2 + $0x70] sm:$0xff]
    %v71 = vld [vmem:[#allocation2 + $0x78] sm:$0xff]
    %v72 = vld [vmem:[#allocation2 + $0x80] sm:$0xff]
    %v73 = vld [vmem:[#allocation2 + $0x88] sm:$0xff]
    %v74 = vld [vmem:[#allocation2 + $0x90] sm:$0xff]
    %v75 = vld [vmem:[#allocation2 + $0x98] sm:$0xff]
    %v76 = vld [vmem:[#allocation2 + $0xa0] sm:$0xff]
    %v77 = vld [vmem:[#allocation2 + $0xa8] sm:$0xff]
    %v78 = vld [vmem:[#allocation2 + $0xb0] sm:$0xff]
    %v79 = vld [vmem:[#allocation2 + $0xb8] sm:$0xff]
    %v80 = vld [vmem:[#allocation2 + $0xc0] sm:$0xff]
    %v81 = vld [vmem:[#allocation2 + $0xc8] sm:$0xff]
    %v82 = vld [vmem:[#allocation2 + $0xd0] sm:$0xff]
    %v83 = vld [vmem:[#allocation2 + $0xd8] sm:$0xff]
    %v84 = vld [vmem:[#allocation2 + $0xe0] sm:$0xff]
    %v85 = vld [vmem:[#allocation2 + $0xe8] sm:$0xff]
    %v86 = vld [vmem:[#allocation2 + $0xf0] sm:$0xff]
    %v87 = vld [vmem:[#allocation2 + $0xf8] sm:$0xff]
    loop: start=0, step=1, limit=3
    $region26: #{tpu_custom_call.1} parent=1 // loop_pre_header
      _
    $region27: #{tpu_custom_call.1} parent=1 // loop_header
      %s89 = sphi 0, %s93
      %p90 = scmp.ge.s32.totalorder %s89, 3
      %v94 = vphi %v56, %v377
      %v95 = vphi %v57, %v378
      %v96 = vphi %v58, %v379
      %v97 = vphi %v59, %v380
      %v98 = vphi %v60, %v381
      %v99 = vphi %v61, %v382
      %v100 = vphi %v62, %v383
      %v101 = vphi %v63, %v384
      %v102 = vphi %v64, %v385
      %v103 = vphi %v65, %v386
      %v104 = vphi %v66, %v387
      %v105 = vphi %v67, %v388
      %v106 = vphi %v68, %v389
      %v107 = vphi %v69, %v390
      %v108 = vphi %v70, %v391
      %v109 = vphi %v71, %v392
      %v110 = vphi %v72, %v393
      %v111 = vphi %v73, %v394
      %v112 = vphi %v74, %v395
      %v113 = vphi %v75, %v396
      %v114 = vphi %v76, %v397
      %v115 = vphi %v77, %v398
      %v116 = vphi %v78, %v399
      %v117 = vphi %v79, %v400
      %v118 = vphi %v80, %v401
      %v119 = vphi %v81, %v402
      %v120 = vphi %v82, %v403
      %v121 = vphi %v83, %v404
      %v122 = vphi %v84, %v405
      %v123 = vphi %v85, %v406
      %v124 = vphi %v86, %v407
      %v125 = vphi %v87, %v408
    $region28: #{tpu_custom_call.1} parent=1 // loop_header_branch
      %92 = sbr.rel (%p90) target = $region32
    $region29: #{tpu_custom_call.1} parent=1 // loop_body
      %s126 = smul.u32 %s89, 128
      %s127 = scalar_lea.vmem [#allocation5], %s126
      %v128 = vld [vmem:[%s127] sm:$0xff]
      %v129 = vld [vmem:[%s127 + $0x8] sm:$0xff]
      %v130 = vld [vmem:[%s127 + $0x10] sm:$0xff]
      %v131 = vld [vmem:[%s127 + $0x18] sm:$0xff]
      %v132 = vld [vmem:[%s127 + $0x20] sm:$0xff]
      %v133 = vld [vmem:[%s127 + $0x28] sm:$0xff]
      %v134 = vld [vmem:[%s127 + $0x30] sm:$0xff]
      %v135 = vld [vmem:[%s127 + $0x38] sm:$0xff]
      %v136 = vld [vmem:[%s127 + $0x40] sm:$0xff]
      %v137 = vld [vmem:[%s127 + $0x48] sm:$0xff]
      %v138 = vld [vmem:[%s127 + $0x50] sm:$0xff]
      %v139 = vld [vmem:[%s127 + $0x58] sm:$0xff]
      %v140 = vld [vmem:[%s127 + $0x60] sm:$0xff]
      %v141 = vld [vmem:[%s127 + $0x68] sm:$0xff]
      %v142 = vld [vmem:[%s127 + $0x70] sm:$0xff]
      %v143 = vld [vmem:[%s127 + $0x78] sm:$0xff]
      %s144 = scalar_lea.vmem [#allocation7], %s89
      %v145 = vld [vmem:[%s144] sm:$0x1]
      %v147 = vlaneseq
      %v148 = vshrl.u32 %v147, 7
      %v149 = vsub.s32 0, %v148
      %v150 = vrot.slane %v145, %v149
      %152 = vmatprep.subr.mxu0 0.0
      %153 = vmatpush1.msra.mxu0 %v143
      %154 = vmatprep.subr.mxu0 0.0
      %155 = vmatpush1.msra.mxu0 %v142
      %156 = vmatprep.subr.mxu0 0.0
      %157 = vmatpush1.msra.mxu0 %v141
      %158 = vmatprep.subr.mxu0 0.0
      %159 = vmatpush1.msra.mxu0 %v140
      %160 = vmatprep.subr.mxu0 0.0
      %161 = vmatpush1.msra.mxu0 %v139
      %162 = vmatprep.subr.mxu0 0.0
      %163 = vmatpush1.msra.mxu0 %v138
      %164 = vmatprep.subr.mxu0 0.0
      %165 = vmatpush1.msra.mxu0 %v137
      %166 = vmatprep.subr.mxu0 0.0
      %167 = vmatpush1.msra.mxu0 %v136
      %168 = vmatprep.subr.mxu0 0.0
      %169 = vmatpush1.msra.mxu0 %v135
      %170 = vmatprep.subr.mxu0 0.0
      %171 = vmatpush1.msra.mxu0 %v134
      %172 = vmatprep.subr.mxu0 0.0
      %173 = vmatpush1.msra.mxu0 %v133
      %174 = vmatprep.subr.mxu0 0.0
      %175 = vmatpush1.msra.mxu0 %v132
      %176 = vmatprep.subr.mxu0 0.0
      %177 = vmatpush1.msra.mxu0 %v131
      %178 = vmatprep.subr.mxu0 0.0
      %179 = vmatpush1.msra.mxu0 %v130
      %180 = vmatprep.subr.mxu0 0.0
      %181 = vmatpush1.msra.mxu0 %v129
      %182 = vmatprep.subr.mxu0 0.0
      %183 = vmatpush1.msra.mxu0 %v128
      %184 = vmatprep.subr.mxu0 0.0
      %185 = vmatpush2.msra.mxu0 0.0
      %186 = vmatprep.subr.mxu0 0.0
      %187 = vmatpush2.msra.mxu0 0.0
      %188 = vmatprep.subr.mxu0 0.0
      %189 = vmatpush2.msra.mxu0 0.0
      %190 = vmatprep.subr.mxu0 0.0
      %191 = vmatpush2.msra.mxu0 0.0
      %192 = vmatprep.subr.mxu0 0.0
      %193 = vmatpush2.msra.mxu0 0.0
      %194 = vmatprep.subr.mxu0 0.0
      %195 = vmatpush2.msra.mxu0 0.0
      %196 = vmatprep.subr.mxu0 0.0
      %197 = vmatpush2.msra.mxu0 0.0
      %198 = vmatprep.subr.mxu0 0.0
      %199 = vmatpush2.msra.mxu0 0.0
      %200 = vmatprep.subr.mxu0 0.0
      %201 = vmatpush2.msra.mxu0 0.0
      %202 = vmatprep.subr.mxu0 0.0
      %203 = vmatpush2.msra.mxu0 0.0
      %204 = vmatprep.subr.mxu0 0.0
      %205 = vmatpush2.msra.mxu0 0.0
      %206 = vmatprep.subr.mxu0 0.0
      %207 = vmatpush2.msra.mxu0 0.0
      %208 = vmatprep.subr.mxu0 0.0
      %209 = vmatpush2.msra.mxu0 0.0
      %210 = vmatprep.subr.mxu0 0.0
      %211 = vmatpush2.msra.mxu0 0.0
      %212 = vmatprep.subr.mxu0 0.0
      %213 = vmatpush2.msra.mxu0 0.0
      %214 = vmatprep.subr.mxu0 0.0
      %215 = vmatpush2.msra.mxu0 0.0
      %216 = vmatprep.mubr.f32.mxu0 0.0
      %217 = vmatmul.mubr.f32.gmra.mxu0 %v94
      %v218 = vpop.f32.mrf.mxu0
      %v219 = vadd.f32 %v150, %v218
      %v220 = vpop.f32.mrf.mxu0
      %221 = vmatprep.mubr.f32.mxu0 0.0
      %222 = vmatmul.mubr.f32.gmra.mxu0 %v95
      %v223 = vpop.f32.mrf.mxu0
      %v224 = vadd.f32 %v150, %v223
      %v225 = vpop.f32.mrf.mxu0
      %226 = vmatprep.mubr.f32.mxu0 0.0
      %227 = vmatmul.mubr.f32.gmra.mxu0 %v96
      %v228 = vpop.f32.mrf.mxu0
      %v229 = vadd.f32 %v150, %v228
      %v230 = vpop.f32.mrf.mxu0
      %231 = vmatprep.mubr.f32.mxu0 0.0
      %232 = vmatmul.mubr.f32.gmra.mxu0 %v97
      %v233 = vpop.f32.mrf.mxu0
      %v234 = vadd.f32 %v150, %v233
      %v235 = vpop.f32.mrf.mxu0
      %236 = vmatprep.mubr.f32.mxu0 0.0
      %237 = vmatmul.mubr.f32.gmra.mxu0 %v98
      %v238 = vpop.f32.mrf.mxu0
      %v239 = vadd.f32 %v150, %v238
      %v240 = vpop.f32.mrf.mxu0
      %241 = vmatprep.mubr.f32.mxu0 0.0
      %242 = vmatmul.mubr.f32.gmra.mxu0 %v99
      %v243 = vpop.f32.mrf.mxu0
      %v244 = vadd.f32 %v150, %v243
      %v245 = vpop.f32.mrf.mxu0
      %246 = vmatprep.mubr.f32.mxu0 0.0
      %247 = vmatmul.mubr.f32.gmra.mxu0 %v100
      %v248 = vpop.f32.mrf.mxu0
      %v249 = vadd.f32 %v150, %v248
      %v250 = vpop.f32.mrf.mxu0
      %251 = vmatprep.mubr.f32.mxu0 0.0
      %252 = vmatmul.mubr.f32.gmra.mxu0 %v101
      %v253 = vpop.f32.mrf.mxu0
      %v254 = vadd.f32 %v150, %v253
      %v255 = vpop.f32.mrf.mxu0
      %256 = vmatprep.mubr.f32.mxu0 0.0
      %257 = vmatmul.mubr.f32.gmra.mxu0 %v102
      %v258 = vpop.f32.mrf.mxu0
      %v259 = vadd.f32 %v150, %v258
      %v260 = vpop.f32.mrf.mxu0
      %261 = vmatprep.mubr.f32.mxu0 0.0
      %262 = vmatmul.mubr.f32.gmra.mxu0 %v103
      %v263 = vpop.f32.mrf.mxu0
      %v264 = vadd.f32 %v150, %v263
      %v265 = vpop.f32.mrf.mxu0
      %266 = vmatprep.mubr.f32.mxu0 0.0
      %267 = vmatmul.mubr.f32.gmra.mxu0 %v104
      %v268 = vpop.f32.mrf.mxu0
      %v269 = vadd.f32 %v150, %v268
      %v270 = vpop.f32.mrf.mxu0
      %271 = vmatprep.mubr.f32.mxu0 0.0
      %272 = vmatmul.mubr.f32.gmra.mxu0 %v105
      %v273 = vpop.f32.mrf.mxu0
      %v274 = vadd.f32 %v150, %v273
      %v275 = vpop.f32.mrf.mxu0
      %276 = vmatprep.mubr.f32.mxu0 0.0
      %277 = vmatmul.mubr.f32.gmra.mxu0 %v106
      %v278 = vpop.f32.mrf.mxu0
      %v279 = vadd.f32 %v150, %v278
      %v280 = vpop.f32.mrf.mxu0
      %281 = vmatprep.mubr.f32.mxu0 0.0
      %282 = vmatmul.mubr.f32.gmra.mxu0 %v107
      %v283 = vpop.f32.mrf.mxu0
      %v284 = vadd.f32 %v150, %v283
      %v285 = vpop.f32.mrf.mxu0
      %286 = vmatprep.mubr.f32.mxu0 0.0
      %287 = vmatmul.mubr.f32.gmra.mxu0 %v108
      %v288 = vpop.f32.mrf.mxu0
      %v289 = vadd.f32 %v150, %v288
      %v290 = vpop.f32.mrf.mxu0
      %291 = vmatprep.mubr.f32.mxu0 0.0
      %292 = vmatmul.mubr.f32.gmra.mxu0 %v109
      %v293 = vpop.f32.mrf.mxu0
      %v294 = vadd.f32 %v150, %v293
      %v295 = vpop.f32.mrf.mxu0
      %296 = vmatprep.mubr.f32.mxu0 0.0
      %297 = vmatmul.mubr.f32.gmra.mxu0 %v110
      %v298 = vpop.f32.mrf.mxu0
      %v299 = vadd.f32 %v150, %v298
      %v300 = vpop.f32.mrf.mxu0
      %301 = vmatprep.mubr.f32.mxu0 0.0
      %302 = vmatmul.mubr.f32.gmra.mxu0 %v111
      %v303 = vpop.f32.mrf.mxu0
      %v304 = vadd.f32 %v150, %v303
      %v305 = vpop.f32.mrf.mxu0
      %306 = vmatprep.mubr.f32.mxu0 0.0
      %307 = vmatmul.mubr.f32.gmra.mxu0 %v112
      %v308 = vpop.f32.mrf.mxu0
      %v309 = vadd.f32 %v150, %v308
      %v310 = vpop.f32.mrf.mxu0
      %311 = vmatprep.mubr.f32.mxu0 0.0
      %312 = vmatmul.mubr.f32.gmra.mxu0 %v113
      %v313 = vpop.f32.mrf.mxu0
      %v314 = vadd.f32 %v150, %v313
      %v315 = vpop.f32.mrf.mxu0
      %316 = vmatprep.mubr.f32.mxu0 0.0
      %317 = vmatmul.mubr.f32.gmra.mxu0 %v114
      %v318 = vpop.f32.mrf.mxu0
      %v319 = vadd.f32 %v150, %v318
      %v320 = vpop.f32.mrf.mxu0
      %321 = vmatprep.mubr.f32.mxu0 0.0
      %322 = vmatmul.mubr.f32.gmra.mxu0 %v115
      %v323 = vpop.f32.mrf.mxu0
      %v324 = vadd.f32 %v150, %v323
      %v325 = vpop.f32.mrf.mxu0
      %326 = vmatprep.mubr.f32.mxu0 0.0
      %327 = vmatmul.mubr.f32.gmra.mxu0 %v116
      %v328 = vpop.f32.mrf.mxu0
      %v329 = vadd.f32 %v150, %v328
      %v330 = vpop.f32.mrf.mxu0
      %331 = vmatprep.mubr.f32.mxu0 0.0
      %332 = vmatmul.mubr.f32.gmra.mxu0 %v117
      %v333 = vpop.f32.mrf.mxu0
      %v334 = vadd.f32 %v150, %v333
      %v335 = vpop.f32.mrf.mxu0
      %336 = vmatprep.mubr.f32.mxu0 0.0
      %337 = vmatmul.mubr.f32.gmra.mxu0 %v118
      %v338 = vpop.f32.mrf.mxu0
      %v339 = vadd.f32 %v150, %v338
      %v340 = vpop.f32.mrf.mxu0
      %341 = vmatprep.mubr.f32.mxu0 0.0
      %342 = vmatmul.mubr.f32.gmra.mxu0 %v119
      %v343 = vpop.f32.mrf.mxu0
      %v344 = vadd.f32 %v150, %v343
      %v345 = vpop.f32.mrf.mxu0
      %346 = vmatprep.mubr.f32.mxu0 0.0
      %347 = vmatmul.mubr.f32.gmra.mxu0 %v120
      %v348 = vpop.f32.mrf.mxu0
      %v349 = vadd.f32 %v150, %v348
      %v350 = vpop.f32.mrf.mxu0
      %351 = vmatprep.mubr.f32.mxu0 0.0
      %352 = vmatmul.mubr.f32.gmra.mxu0 %v121
      %v353 = vpop.f32.mrf.mxu0
      %v354 = vadd.f32 %v150, %v353
      %v355 = vpop.f32.mrf.mxu0
      %356 = vmatprep.mubr.f32.mxu0 0.0
      %357 = vmatmul.mubr.f32.gmra.mxu0 %v122
      %v358 = vpop.f32.mrf.mxu0
      %v359 = vadd.f32 %v150, %v358
      %v360 = vpop.f32.mrf.mxu0
      %361 = vmatprep.mubr.f32.mxu0 0.0
      %362 = vmatmul.mubr.f32.gmra.mxu0 %v123
      %v363 = vpop.f32.mrf.mxu0
      %v364 = vadd.f32 %v150, %v363
      %v365 = vpop.f32.mrf.mxu0
      %366 = vmatprep.mubr.f32.mxu0 0.0
      %367 = vmatmul.mubr.f32.gmra.mxu0 %v124
      %v368 = vpop.f32.mrf.mxu0
      %v369 = vadd.f32 %v150, %v368
      %v370 = vpop.f32.mrf.mxu0
      %371 = vmatprep.mubr.f32.mxu0 0.0
      %372 = vmatmul.mubr.f32.gmra.mxu0 %v125
      %v373 = vpop.f32.mrf.mxu0
      %v374 = vadd.f32 %v150, %v373
      %v375 = vpop.f32.mrf.mxu0
      %376 = vdwg.mxu0
      %v377 = vmax.f32 %v219, 0.0
      %v378 = vmax.f32 %v224, 0.0
      %v379 = vmax.f32 %v229, 0.0
      %v380 = vmax.f32 %v234, 0.0
      %v381 = vmax.f32 %v239, 0.0
      %v382 = vmax.f32 %v244, 0.0
      %v383 = vmax.f32 %v249, 0.0
      %v384 = vmax.f32 %v254, 0.0
      %v385 = vmax.f32 %v259, 0.0
      %v386 = vmax.f32 %v264, 0.0
      %v387 = vmax.f32 %v269, 0.0
      %v388 = vmax.f32 %v274, 0.0
      %v389 = vmax.f32 %v279, 0.0
      %v390 = vmax.f32 %v284, 0.0
      %v391 = vmax.f32 %v289, 0.0
      %v392 = vmax.f32 %v294, 0.0
      %v393 = vmax.f32 %v299, 0.0
      %v394 = vmax.f32 %v304, 0.0
      %v395 = vmax.f32 %v309, 0.0
      %v396 = vmax.f32 %v314, 0.0
      %v397 = vmax.f32 %v319, 0.0
      %v398 = vmax.f32 %v324, 0.0
      %v399 = vmax.f32 %v329, 0.0
      %v400 = vmax.f32 %v334, 0.0
      %v401 = vmax.f32 %v339, 0.0
      %v402 = vmax.f32 %v344, 0.0
      %v403 = vmax.f32 %v349, 0.0
      %v404 = vmax.f32 %v354, 0.0
      %v405 = vmax.f32 %v359, 0.0
      %v406 = vmax.f32 %v364, 0.0
      %v407 = vmax.f32 %v369, 0.0
      %v408 = vmax.f32 %v374, 0.0
    $region30: #{tpu_custom_call.1} parent=1 // loop_footer
      %s93 = sadd.s32 1, %s89
    $region31: #{tpu_custom_call.1} parent=1 // loop_footer_branch
      %88 = sbr.rel target = $region27
    $region32: #{tpu_custom_call.1} parent=1 // loop_exit
      _
    %s409 = scalar_lea.vmem [#allocation5], 384
    %v410 = vld [vmem:[%s409] sm:$0xff]
    %v411 = vld [vmem:[%s409 + $0x8] sm:$0xff]
    %v412 = vld [vmem:[%s409 + $0x10] sm:$0xff]
    %v413 = vld [vmem:[%s409 + $0x18] sm:$0xff]
    %v414 = vld [vmem:[%s409 + $0x20] sm:$0xff]
    %v415 = vld [vmem:[%s409 + $0x28] sm:$0xff]
    %v416 = vld [vmem:[%s409 + $0x30] sm:$0xff]
    %v417 = vld [vmem:[%s409 + $0x38] sm:$0xff]
    %v418 = vld [vmem:[%s409 + $0x40] sm:$0xff]
    %v419 = vld [vmem:[%s409 + $0x48] sm:$0xff]
    %v420 = vld [vmem:[%s409 + $0x50] sm:$0xff]
    %v421 = vld [vmem:[%s409 + $0x58] sm:$0xff]
    %v422 = vld [vmem:[%s409 + $0x60] sm:$0xff]
    %v423 = vld [vmem:[%s409 + $0x68] sm:$0xff]
    %v424 = vld [vmem:[%s409 + $0x70] sm:$0xff]
    %v425 = vld [vmem:[%s409 + $0x78] sm:$0xff]
    %s426 = scalar_lea.vmem [#allocation7], 3
    %v427 = vld [vmem:[%s426] sm:$0x1]
    %v429 = vlaneseq
    %v430 = vshrl.u32 %v429, 7
    %v431 = vsub.s32 0, %v430
    %v432 = vrot.slane %v427, %v431
    %434 = vmatprep.subr.mxu0 0.0
    %435 = vmatpush1.msra.mxu0 %v425
    %436 = vmatprep.subr.mxu0 0.0
    %437 = vmatpush1.msra.mxu0 %v424
    %438 = vmatprep.subr.mxu0 0.0
    %439 = vmatpush1.msra.mxu0 %v423
    %440 = vmatprep.subr.mxu0 0.0
    %441 = vmatpush1.msra.mxu0 %v422
    %442 = vmatprep.subr.mxu0 0.0
    %443 = vmatpush1.msra.mxu0 %v421
    %444 = vmatprep.subr.mxu0 0.0
    %445 = vmatpush1.msra.mxu0 %v420
    %446 = vmatprep.subr.mxu0 0.0
    %447 = vmatpush1.msra.mxu0 %v419
    %448 = vmatprep.subr.mxu0 0.0
    %449 = vmatpush1.msra.mxu0 %v418
    %450 = vmatprep.subr.mxu0 0.0
    %451 = vmatpush1.msra.mxu0 %v417
    %452 = vmatprep.subr.mxu0 0.0
    %453 = vmatpush1.msra.mxu0 %v416
    %454 = vmatprep.subr.mxu0 0.0
    %455 = vmatpush1.msra.mxu0 %v415
    %456 = vmatprep.subr.mxu0 0.0
    %457 = vmatpush1.msra.mxu0 %v414
    %458 = vmatprep.subr.mxu0 0.0
    %459 = vmatpush1.msra.mxu0 %v413
    %460 = vmatprep.subr.mxu0 0.0
    %461 = vmatpush1.msra.mxu0 %v412
    %462 = vmatprep.subr.mxu0 0.0
    %463 = vmatpush1.msra.mxu0 %v411
    %464 = vmatprep.subr.mxu0 0.0
    %465 = vmatpush1.msra.mxu0 %v410
    %466 = vmatprep.subr.mxu0 0.0
    %467 = vmatpush2.msra.mxu0 0.0
    %468 = vmatprep.subr.mxu0 0.0
    %469 = vmatpush2.msra.mxu0 0.0
    %470 = vmatprep.subr.mxu0 0.0
    %471 = vmatpush2.msra.mxu0 0.0
    %472 = vmatprep.subr.mxu0 0.0
    %473 = vmatpush2.msra.mxu0 0.0
    %474 = vmatprep.subr.mxu0 0.0
    %475 = vmatpush2.msra.mxu0 0.0
    %476 = vmatprep.subr.mxu0 0.0
    %477 = vmatpush2.msra.mxu0 0.0
    %478 = vmatprep.subr.mxu0 0.0
    %479 = vmatpush2.msra.mxu0 0.0
    %480 = vmatprep.subr.mxu0 0.0
    %481 = vmatpush2.msra.mxu0 0.0
    %482 = vmatprep.subr.mxu0 0.0
    %483 = vmatpush2.msra.mxu0 0.0
    %484 = vmatprep.subr.mxu0 0.0
    %485 = vmatpush2.msra.mxu0 0.0
    %486 = vmatprep.subr.mxu0 0.0
    %487 = vmatpush2.msra.mxu0 0.0
    %488 = vmatprep.subr.mxu0 0.0
    %489 = vmatpush2.msra.mxu0 0.0
    %490 = vmatprep.subr.mxu0 0.0
    %491 = vmatpush2.msra.mxu0 0.0
    %492 = vmatprep.subr.mxu0 0.0
    %493 = vmatpush2.msra.mxu0 0.0
    %494 = vmatprep.subr.mxu0 0.0
    %495 = vmatpush2.msra.mxu0 0.0
    %496 = vmatprep.subr.mxu0 0.0
    %497 = vmatpush2.msra.mxu0 0.0
    %498 = vmatprep.mubr.f32.mxu0 0.0
    %499 = vmatmul.mubr.f32.gmra.mxu0 %v94
    %v500 = vpop.f32.mrf.mxu0
    %v501 = vadd.f32 %v432, %v500
    %v502 = vpop.f32.mrf.mxu0
    %503 = vmatprep.mubr.f32.mxu0 0.0
    %504 = vmatmul.mubr.f32.gmra.mxu0 %v95
    %v505 = vpop.f32.mrf.mxu0
    %v506 = vadd.f32 %v432, %v505
    %v507 = vpop.f32.mrf.mxu0
    %508 = vmatprep.mubr.f32.mxu0 0.0
    %509 = vmatmul.mubr.f32.gmra.mxu0 %v96
    %v510 = vpop.f32.mrf.mxu0
    %v511 = vadd.f32 %v432, %v510
    %v512 = vpop.f32.mrf.mxu0
    %513 = vmatprep.mubr.f32.mxu0 0.0
    %514 = vmatmul.mubr.f32.gmra.mxu0 %v97
    %v515 = vpop.f32.mrf.mxu0
    %v516 = vadd.f32 %v432, %v515
    %v517 = vpop.f32.mrf.mxu0
    %518 = vmatprep.mubr.f32.mxu0 0.0
    %519 = vmatmul.mubr.f32.gmra.mxu0 %v98
    %v520 = vpop.f32.mrf.mxu0
    %v521 = vadd.f32 %v432, %v520
    %v522 = vpop.f32.mrf.mxu0
    %523 = vmatprep.mubr.f32.mxu0 0.0
    %524 = vmatmul.mubr.f32.gmra.mxu0 %v99
    %v525 = vpop.f32.mrf.mxu0
    %v526 = vadd.f32 %v432, %v525
    %v527 = vpop.f32.mrf.mxu0
    %528 = vmatprep.mubr.f32.mxu0 0.0
    %529 = vmatmul.mubr.f32.gmra.mxu0 %v100
    %v530 = vpop.f32.mrf.mxu0
    %v531 = vadd.f32 %v432, %v530
    %v532 = vpop.f32.mrf.mxu0
    %533 = vmatprep.mubr.f32.mxu0 0.0
    %534 = vmatmul.mubr.f32.gmra.mxu0 %v101
    %v535 = vpop.f32.mrf.mxu0
    %v536 = vadd.f32 %v432, %v535
    %v537 = vpop.f32.mrf.mxu0
    %538 = vmatprep.mubr.f32.mxu0 0.0
    %539 = vmatmul.mubr.f32.gmra.mxu0 %v102
    %v540 = vpop.f32.mrf.mxu0
    %v541 = vadd.f32 %v432, %v540
    %v542 = vpop.f32.mrf.mxu0
    %543 = vmatprep.mubr.f32.mxu0 0.0
    %544 = vmatmul.mubr.f32.gmra.mxu0 %v103
    %v545 = vpop.f32.mrf.mxu0
    %v546 = vadd.f32 %v432, %v545
    %v547 = vpop.f32.mrf.mxu0
    %548 = vmatprep.mubr.f32.mxu0 0.0
    %549 = vmatmul.mubr.f32.gmra.mxu0 %v104
    %v550 = vpop.f32.mrf.mxu0
    %v551 = vadd.f32 %v432, %v550
    %v552 = vpop.f32.mrf.mxu0
    %553 = vmatprep.mubr.f32.mxu0 0.0
    %554 = vmatmul.mubr.f32.gmra.mxu0 %v105
    %v555 = vpop.f32.mrf.mxu0
    %v556 = vadd.f32 %v432, %v555
    %v557 = vpop.f32.mrf.mxu0
    %558 = vmatprep.mubr.f32.mxu0 0.0
    %559 = vmatmul.mubr.f32.gmra.mxu0 %v106
    %v560 = vpop.f32.mrf.mxu0
    %v561 = vadd.f32 %v432, %v560
    %v562 = vpop.f32.mrf.mxu0
    %563 = vmatprep.mubr.f32.mxu0 0.0
    %564 = vmatmul.mubr.f32.gmra.mxu0 %v107
    %v565 = vpop.f32.mrf.mxu0
    %v566 = vadd.f32 %v432, %v565
    %v567 = vpop.f32.mrf.mxu0
    %568 = vmatprep.mubr.f32.mxu0 0.0
    %569 = vmatmul.mubr.f32.gmra.mxu0 %v108
    %v570 = vpop.f32.mrf.mxu0
    %v571 = vadd.f32 %v432, %v570
    %v572 = vpop.f32.mrf.mxu0
    %573 = vmatprep.mubr.f32.mxu0 0.0
    %574 = vmatmul.mubr.f32.gmra.mxu0 %v109
    %v575 = vpop.f32.mrf.mxu0
    %v576 = vadd.f32 %v432, %v575
    %v577 = vpop.f32.mrf.mxu0
    %578 = vmatprep.mubr.f32.mxu0 0.0
    %579 = vmatmul.mubr.f32.gmra.mxu0 %v110
    %v580 = vpop.f32.mrf.mxu0
    %v581 = vadd.f32 %v432, %v580
    %v582 = vpop.f32.mrf.mxu0
    %583 = vmatprep.mubr.f32.mxu0 0.0
    %584 = vmatmul.mubr.f32.gmra.mxu0 %v111
    %v585 = vpop.f32.mrf.mxu0
    %v586 = vadd.f32 %v432, %v585
    %v587 = vpop.f32.mrf.mxu0
    %588 = vmatprep.mubr.f32.mxu0 0.0
    %589 = vmatmul.mubr.f32.gmra.mxu0 %v112
    %v590 = vpop.f32.mrf.mxu0
    %v591 = vadd.f32 %v432, %v590
    %v592 = vpop.f32.mrf.mxu0
    %593 = vmatprep.mubr.f32.mxu0 0.0
    %594 = vmatmul.mubr.f32.gmra.mxu0 %v113
    %v595 = vpop.f32.mrf.mxu0
    %v596 = vadd.f32 %v432, %v595
    %v597 = vpop.f32.mrf.mxu0
    %598 = vmatprep.mubr.f32.mxu0 0.0
    %599 = vmatmul.mubr.f32.gmra.mxu0 %v114
    %v600 = vpop.f32.mrf.mxu0
    %v601 = vadd.f32 %v432, %v600
    %v602 = vpop.f32.mrf.mxu0
    %603 = vmatprep.mubr.f32.mxu0 0.0
    %604 = vmatmul.mubr.f32.gmra.mxu0 %v115
    %v605 = vpop.f32.mrf.mxu0
    %v606 = vadd.f32 %v432, %v605
    %v607 = vpop.f32.mrf.mxu0
    %608 = vmatprep.mubr.f32.mxu0 0.0
    %609 = vmatmul.mubr.f32.gmra.mxu0 %v116
    %v610 = vpop.f32.mrf.mxu0
    %v611 = vadd.f32 %v432, %v610
    %v612 = vpop.f32.mrf.mxu0
    %613 = vmatprep.mubr.f32.mxu0 0.0
    %614 = vmatmul.mubr.f32.gmra.mxu0 %v117
    %v615 = vpop.f32.mrf.mxu0
    %v616 = vadd.f32 %v432, %v615
    %v617 = vpop.f32.mrf.mxu0
    %618 = vmatprep.mubr.f32.mxu0 0.0
    %619 = vmatmul.mubr.f32.gmra.mxu0 %v118
    %v620 = vpop.f32.mrf.mxu0
    %v621 = vadd.f32 %v432, %v620
    %v622 = vpop.f32.mrf.mxu0
    %623 = vmatprep.mubr.f32.mxu0 0.0
    %624 = vmatmul.mubr.f32.gmra.mxu0 %v119
    %v625 = vpop.f32.mrf.mxu0
    %v626 = vadd.f32 %v432, %v625
    %v627 = vpop.f32.mrf.mxu0
    %628 = vmatprep.mubr.f32.mxu0 0.0
    %629 = vmatmul.mubr.f32.gmra.mxu0 %v120
    %v630 = vpop.f32.mrf.mxu0
    %v631 = vadd.f32 %v432, %v630
    %v632 = vpop.f32.mrf.mxu0
    %633 = vmatprep.mubr.f32.mxu0 0.0
    %634 = vmatmul.mubr.f32.gmra.mxu0 %v121
    %v635 = vpop.f32.mrf.mxu0
    %v636 = vadd.f32 %v432, %v635
    %v637 = vpop.f32.mrf.mxu0
    %638 = vmatprep.mubr.f32.mxu0 0.0
    %639 = vmatmul.mubr.f32.gmra.mxu0 %v122
    %v640 = vpop.f32.mrf.mxu0
    %v641 = vadd.f32 %v432, %v640
    %v642 = vpop.f32.mrf.mxu0
    %643 = vmatprep.mubr.f32.mxu0 0.0
    %644 = vmatmul.mubr.f32.gmra.mxu0 %v123
    %v645 = vpop.f32.mrf.mxu0
    %v646 = vadd.f32 %v432, %v645
    %v647 = vpop.f32.mrf.mxu0
    %648 = vmatprep.mubr.f32.mxu0 0.0
    %649 = vmatmul.mubr.f32.gmra.mxu0 %v124
    %v650 = vpop.f32.mrf.mxu0
    %v651 = vadd.f32 %v432, %v650
    %v652 = vpop.f32.mrf.mxu0
    %653 = vmatprep.mubr.f32.mxu0 0.0
    %654 = vmatmul.mubr.f32.gmra.mxu0 %v125
    %v655 = vpop.f32.mrf.mxu0
    %v656 = vadd.f32 %v432, %v655
    %v657 = vpop.f32.mrf.mxu0
    %658 = vdwg.mxu0
    %659 = vst [vmem:[#allocation8] sm:$0xff] %v501
    %660 = vst [vmem:[#allocation8 + $0x8] sm:$0xff] %v506
    %661 = vst [vmem:[#allocation8 + $0x10] sm:$0xff] %v511
    %662 = vst [vmem:[#allocation8 + $0x18] sm:$0xff] %v516
    %663 = vst [vmem:[#allocation8 + $0x20] sm:$0xff] %v521
    %664 = vst [vmem:[#allocation8 + $0x28] sm:$0xff] %v526
    %665 = vst [vmem:[#allocation8 + $0x30] sm:$0xff] %v531
    %666 = vst [vmem:[#allocation8 + $0x38] sm:$0xff] %v536
    %667 = vst [vmem:[#allocation8 + $0x40] sm:$0xff] %v541
    %668 = vst [vmem:[#allocation8 + $0x48] sm:$0xff] %v546
    %669 = vst [vmem:[#allocation8 + $0x50] sm:$0xff] %v551
    %670 = vst [vmem:[#allocation8 + $0x58] sm:$0xff] %v556
    %671 = vst [vmem:[#allocation8 + $0x60] sm:$0xff] %v561
    %672 = vst [vmem:[#allocation8 + $0x68] sm:$0xff] %v566
    %673 = vst [vmem:[#allocation8 + $0x70] sm:$0xff] %v571
    %674 = vst [vmem:[#allocation8 + $0x78] sm:$0xff] %v576
    %675 = vst [vmem:[#allocation8 + $0x80] sm:$0xff] %v581
    %676 = vst [vmem:[#allocation8 + $0x88] sm:$0xff] %v586
    %677 = vst [vmem:[#allocation8 + $0x90] sm:$0xff] %v591
    %678 = vst [vmem:[#allocation8 + $0x98] sm:$0xff] %v596
    %679 = vst [vmem:[#allocation8 + $0xa0] sm:$0xff] %v601
    %680 = vst [vmem:[#allocation8 + $0xa8] sm:$0xff] %v606
    %681 = vst [vmem:[#allocation8 + $0xb0] sm:$0xff] %v611
    %682 = vst [vmem:[#allocation8 + $0xb8] sm:$0xff] %v616
    %683 = vst [vmem:[#allocation8 + $0xc0] sm:$0xff] %v621
    %684 = vst [vmem:[#allocation8 + $0xc8] sm:$0xff] %v626
    %685 = vst [vmem:[#allocation8 + $0xd0] sm:$0xff] %v631
    %686 = vst [vmem:[#allocation8 + $0xd8] sm:$0xff] %v636
    %687 = vst [vmem:[#allocation8 + $0xe0] sm:$0xff] %v641
    %688 = vst [vmem:[#allocation8 + $0xe8] sm:$0xff] %v646
    %689 = vst [vmem:[#allocation8 + $0xf0] sm:$0xff] %v651
    %690 = vst [vmem:[#allocation8 + $0xf8] sm:$0xff] %v656
    // Predicated region
    $region33: #{tpu_custom_call.1} parent=1 // pred_check
      _
    $region34: #{tpu_custom_call.1} parent=1 // pred_check_branch
      %692 = sbr.rel (0) target = $region36
    $region35: #{tpu_custom_call.1} parent=1 // pred_region
      %s694 = ssub.s32 4096, 4096
      %695 = vsyncadd [#allocation4], %s694
      %s696 = sshll.u32 [#allocation8], 4
      %s697 = int_to_ptr.vmem [resolvable:$true] %s696
      %702 = dma.vmem_to_hbm [thread:$0]  %s697, 4096, %s3, [#allocation4], 128, 128, 8
    $region36: #{tpu_custom_call.1} parent=1 // pred_fallthru
      _
    // Predicated region
    $region37: #{tpu_custom_call.1} parent=1 // pred_check
      _
    $region38: #{tpu_custom_call.1} parent=1 // pred_check_branch
      %704 = sbr.rel (0) target = $region40
    $region39: #{tpu_custom_call.1} parent=1 // pred_region
      %705 = dma.done [#allocation4], 4096
    $region40: #{tpu_custom_call.1} parent=1 // pred_fallthru
      _
    %706 = vsyncpa [#allocation3], 1
    %707 = vsyncpa [#allocation6], 1
    %708 = vsyncpa [#allocation4], 1

</llo_original>
